<compile_context>
chip_gen: v7x
topology: tpu7x:2x2x1
jax: 0.10.0
libtpu: 0.0.40
codegen_flags: <defaults>
</compile_context>

<pallas_src>
import numpy as np
import jax
import jax.numpy as jnp
from jax.experimental import pallas as pl
from jax.experimental.pallas import tpu as pltpu

BN_EPS = 1e-5
_MIB = 1 << 20


def _round_up(n, m):
    return ((n + m - 1) // m) * m


def _vmem_limit(nbytes):
    # Explicit scoped-VMEM limit: 2x estimated pipeline buffers plus headroom
    # for compiler scratch, capped at 64 MiB (v7x physical VMEM per core).
    return int(min(64 * _MIB, max(2 * nbytes + 4 * _MIB, 16 * _MIB)))


def _spec(shape, index_map, *, single_buffer=False):
    # Grid-invariant operands do not need double buffering; a single buffer
    # halves their VMEM footprint (the biggest resident allocations here).
    if single_buffer and hasattr(pl, "Buffered"):
        try:
            return pl.BlockSpec(shape, index_map, pipeline_mode=pl.Buffered(1))
        except TypeError:
            pass
    return pl.BlockSpec(shape, index_map)


# --------------------------------------------------------------------------
# Kernels
# --------------------------------------------------------------------------
def _layer1_bn_relu_kernel(x_ref, w1_ref, h_ref):
    # (B, Dp) @ (Dp, th) on the MXU, f32 accumulation.
    h = jnp.dot(x_ref[...], w1_ref[...], preferred_element_type=jnp.float32)
    # BatchNorm1d, training mode, fresh module: per-feature batch stats,
    # biased variance, gamma=1, beta=0.  (b1 cancels under the mean subtract.)
    mean = jnp.mean(h, axis=0, keepdims=True)
    var = jnp.mean((h - mean) * (h - mean), axis=0, keepdims=True)
    h = (h - mean) * jax.lax.rsqrt(var + BN_EPS)
    h = jnp.maximum(h, 0.0)
    h_ref[...] = h.astype(h_ref.dtype)


def _layer2_kernel(h_ref, w2_ref, b2_ref, o_ref):
    h = h_ref[...].astype(jnp.bfloat16)  # MXU operand dtype (no-op if bf16)
    o_ref[...] = (
        jnp.dot(h, w2_ref[...], preferred_element_type=jnp.float32)
        + b2_ref[...]
    )


# --------------------------------------------------------------------------
# Wrapper
# --------------------------------------------------------------------------
def prepare_made_weights(w1, b1, mask1, w2, b2, mask2, *, tn=256, th=512):
    """One-time static prep, hoisted out of the per-call path: pre-mask,
    transpose to [in, out], zero-pad feature dims to lane-dense tile multiples,
    cast MXU operands to bf16."""
    H, D = w1.shape
    DM = w2.shape[0]
    del b1  # cancels under fresh training-mode BatchNorm1d (see header note)

    Dp = _round_up(D, 128)
    th = min(th, _round_up(H, 128))
    Hp = _round_up(H, th)
    tn = min(tn, _round_up(DM, 128))
    DMp = _round_up(DM, tn)

    w1t = jnp.zeros((Dp, Hp), jnp.float32).at[:D, :H].set((mask1 * w1).T)
    w2t = jnp.zeros((Hp, DMp), jnp.float32).at[:H, :DM].set((mask2 * w2).T)
    b2p = jnp.zeros((1, DMp), jnp.float32).at[:, :DM].set(jnp.reshape(b2, (1, DM)))

    return dict(
        w1t=w1t.astype(jnp.bfloat16),
        w2t=w2t.astype(jnp.bfloat16),
        b2p=b2p,
        D=D, DM=DM, Dp=Dp, Hp=Hp, DMp=DMp, th=th, tn=tn,
    )


def _forward_impl(xp, p, h_dtype, *, single_buffer):
    B = xp.shape[0]
    Dp, Hp, DMp, th, tn = p["Dp"], p["Hp"], p["DMp"], p["th"], p["tn"]
    h_isz = jnp.dtype(h_dtype).itemsize
    x_bufs = 1 if single_buffer else 2
    h_bufs = 1 if single_buffer else 2

    # ---- call 1: layer 1 + BatchNorm + ReLU, column-tiled over hidden dim ----
    l1_bytes = x_bufs * B * Dp * 2 + 2 * Dp * th * 2 + 2 * B * th * h_isz
    h = pl.pallas_call(
        _layer1_bn_relu_kernel,
        out_shape=jax.ShapeDtypeStruct((B, Hp), h_dtype),
        grid_spec=pltpu.PrefetchScalarGridSpec(
            num_scalar_prefetch=0,
            grid=(Hp // th,),
            in_specs=[
                _spec((B, Dp), lambda j: (0, 0), single_buffer=single_buffer),
                pl.BlockSpec((Dp, th), lambda j: (0, j)),
            ],
            out_specs=pl.BlockSpec((B, th), lambda j: (0, j)),
        ),
        compiler_params=pltpu.CompilerParams(
            dimension_semantics=("parallel",),
            vmem_limit_bytes=_vmem_limit(l1_bytes),
        ),
    )(xp, p["w1t"])

    # ---- call 2: layer 2 matmul + bias, weight-streaming over output cols ----
    l2_bytes = (h_bufs * B * Hp * h_isz + 2 * Hp * tn * 2
                + 2 * 8 * tn * 4 + 2 * B * tn * 4)
    out = pl.pallas_call(
        _layer2_kernel,
        out_shape=jax.ShapeDtypeStruct((B, DMp), jnp.float32),
        grid_spec=pltpu.PrefetchScalarGridSpec(
            num_scalar_prefetch=0,
            grid=(DMp // tn,),
            in_specs=[
                _spec((B, Hp), lambda j: (0, 0), single_buffer=single_buffer),
                pl.BlockSpec((Hp, tn), lambda j: (0, j)),
                pl.BlockSpec((1, tn), lambda j: (0, j)),
            ],
            out_specs=pl.BlockSpec((B, tn), lambda j: (0, j)),
        ),
        compiler_params=pltpu.CompilerParams(
            dimension_semantics=("parallel",),
            vmem_limit_bytes=_vmem_limit(l2_bytes),
        ),
    )(h, p["w2t"], p["b2p"])
    return out


def made_forward(x, params):
    B, D = x.shape
    assert D == params["D"]
    Dp = params["Dp"]
    xp = jnp.zeros((B, Dp), jnp.float32).at[:, :D].set(x).astype(jnp.bfloat16)
    # bf16 h halves the HBM round-trip between the two calls, but at tiny B the
    # sublane packing gain is nil — keep f32 there (also slightly more exact).
    h_dtype = jnp.float32 if B < 16 else jnp.bfloat16
    try:
        out = _forward_impl(xp, params, h_dtype, single_buffer=True)
    except Exception:
        # Fallback if this Pallas build rejects pipeline_mode=pl.Buffered(1).
        out = _forward_impl(xp, params, h_dtype, single_buffer=False)
    return out[:, :params["DM"]]


# --------------------------------------------------------------------------
# Parameter construction (mirrors the PyTorch module) and f32-policy reference
# --------------------------------------------------------------------------
def xavier_uniform(key, out_f, in_f):
    bound = float(np.sqrt(6.0 / (in_f + out_f)))
    return jax.random.uniform(key, (out_f, in_f), jnp.float32, -bound, bound)


def build_made_params(input_dim, hidden_dim, mult, key):
    rng = np.random.RandomState(0)
    m_in = np.arange(input_dim)                                  # m[-1]
    m_hid = rng.randint(0, input_dim - 1, size=hidden_dim)       # m[0]
    m_out = np.arange(input_dim)                                 # m[1]

    mask1 = (m_in[:, np.newaxis] <= m_hid[np.newaxis, :]).T      # (H, D)
    base_mask = (m_hid[:, np.newaxis] < m_out[np.newaxis, :]).T  # (D, H)
    mask2 = np.repeat(base_mask, mult, axis=0)                   # (D*mult, H)

    k1, k2 = jax.random.split(key)
    w1 = xavier_uniform(k1, hidden_dim, input_dim)
    w2 = xavier_uniform(k2, input_dim * mult, hidden_dim)
    b1 = jnp.zeros((1, hidden_dim), jnp.float32)
    b2 = jnp.zeros((1, input_dim * mult), jnp.float32)

    mask1 = jnp.asarray(mask1.astype(np.float32))
    mask2 = jnp.asarray(mask2.astype(np.float32))
    return w1, b1, mask1, w2, b2, mask2


def made_reference(x, w1, b1, mask1, w2, b2, mask2):
    # Module semantics with the kernel's precision policy mirrored:
    # bf16 MXU operands, f32 accumulation / BatchNorm / ReLU / bias.
    q = lambda a: a.astype(jnp.bfloat16).astype(jnp.float32)
    h = q(x) @ q((mask1 * w1).T) + b1            # b1 cancels under training BN
    mean = jnp.mean(h, axis=0, keepdims=True)
    var = jnp.mean((h - mean) ** 2, axis=0, keepdims=True)
    h = (h - mean) * jax.lax.rsqrt(var + BN_EPS)
    h = jnp.maximum(h, 0.0)
    return q(h) @ q((mask2 * w2).T) + b2


if __name__ == "__main__":
    # Small shapes implied by the module: x is [batch, input_dim].
    batch, input_dim, hidden_dim, mult = 8, 16, 32, 2

    key = jax.random.PRNGKey(0)
    kx, kp = jax.random.split(key)
    x = jax.random.normal(kx, (batch, input_dim), jnp.float32)

    w1, b1, mask1, w2, b2, mask2 = build_made_params(input_dim, hidden_dim, mult, kp)
    params = prepare_made_weights(w1, b1, mask1, w2, b2, mask2)   # once, at init

    out = made_forward(x, params)
    out = jax.block_until_ready(out)

    ref = made_reference(x, w1, b1, mask1, w2, b2, mask2)
    assert out.shape == (batch, input_dim * mult)
    np.testing.assert_allclose(np.asarray(out), np.asarray(ref), rtol=2e-3, atol=2e-3)

    print("KERNEL_OK")
</pallas_src>

<mosaic_0001>
module attributes {stable_mosaic.version = 11 : i64} {
  func.func @_layer1_bn_relu_kernel(%arg0: i32, %arg1: memref<8x128xbf16, #tpu.memory_space<vmem>>, %arg2: memref<128x128xbf16, #tpu.memory_space<vmem>>, %arg3: memref<8x128xf32, #tpu.memory_space<vmem>>) attributes {dimension_semantics = [#tpu.dimension_semantics<parallel>], iteration_bounds = array<i64: 1>, scalar_prefetch = 0 : i64, scratch_operands = 0 : i64, tpu.core_type = #tpu.core_type<tc>, window_params = [{pipeline_mode = #tpu.pipeline_mode<synchronous>, transform_indices = @transform_0, window_bounds = array<i64: 8, 128>}, {transform_indices = @transform_1, window_bounds = array<i64: 128, 128>}, {transform_indices = @transform_2, window_bounds = array<i64: 8, 128>}]} {
    %c0 = arith.constant 0 : index
    %c0_0 = arith.constant 0 : index
    %0 = vector.load %arg1[%c0, %c0_0] : memref<8x128xbf16, #tpu.memory_space<vmem>>, vector<8x128xbf16>
    %c0_1 = arith.constant 0 : index
    %c0_2 = arith.constant 0 : index
    %1 = vector.load %arg2[%c0_1, %c0_2] : memref<128x128xbf16, #tpu.memory_space<vmem>>, vector<128x128xbf16>
    %cst = arith.constant dense<0.000000e+00> : vector<8x128xf32>
    %2 = tpu.matmul %0, %1, %cst {dimension_numbers = #tpu.dot_dimension_numbers<[1], [0], [0], [1], [0, 0, 1, 1], [], []>} : vector<8x128xbf16>, vector<128x128xbf16>, vector<8x128xf32> -> vector<8x128xf32>
    %cst_3 = arith.constant dense<0.000000e+00> : vector<128xf32>
    %3 = vector.multi_reduction <add>, %2, %cst_3 [0] : vector<8x128xf32> to vector<128xf32>
    %4 = vector.shape_cast %3 : vector<128xf32> to vector<1x128xf32>
    %cst_4 = arith.constant 8.000000e+00 : f32
    %5 = vector.broadcast %cst_4 : f32 to vector<1x128xf32>
    %6 = arith.divf %4, %5 : vector<1x128xf32>
    %7 = vector.broadcast %6 : vector<1x128xf32> to vector<8x128xf32>
    %8 = arith.subf %2, %7 : vector<8x128xf32>
    %9 = vector.broadcast %6 : vector<1x128xf32> to vector<8x128xf32>
    %10 = arith.subf %2, %9 : vector<8x128xf32>
    %11 = arith.mulf %8, %10 : vector<8x128xf32>
    %cst_5 = arith.constant dense<0.000000e+00> : vector<128xf32>
    %12 = vector.multi_reduction <add>, %11, %cst_5 [0] : vector<8x128xf32> to vector<128xf32>
    %13 = vector.shape_cast %12 : vector<128xf32> to vector<1x128xf32>
    %cst_6 = arith.constant 8.000000e+00 : f32
    %14 = vector.broadcast %cst_6 : f32 to vector<1x128xf32>
    %15 = arith.divf %13, %14 : vector<1x128xf32>
    %16 = vector.broadcast %6 : vector<1x128xf32> to vector<8x128xf32>
    %17 = arith.subf %2, %16 : vector<8x128xf32>
    %cst_7 = arith.constant 9.99999974E-6 : f32
    %18 = vector.broadcast %cst_7 : f32 to vector<1x128xf32>
    %19 = arith.addf %15, %18 : vector<1x128xf32>
    %20 = math.rsqrt %19 : vector<1x128xf32>
    %21 = vector.broadcast %20 : vector<1x128xf32> to vector<8x128xf32>
    %22 = arith.mulf %17, %21 : vector<8x128xf32>
    %cst_8 = arith.constant 0.000000e+00 : f32
    %23 = vector.broadcast %cst_8 : f32 to vector<8x128xf32>
    %24 = arith.maximumf %22, %23 : vector<8x128xf32>
    %c0_9 = arith.constant 0 : index
    %c0_10 = arith.constant 0 : index
    %25 = vector.load %arg3[%c0_9, %c0_10] : memref<8x128xf32, #tpu.memory_space<vmem>>, vector<8x128xf32>
    tpu.vector_store %arg3[%c0_9, %c0_10], %24 {strides = array<i32>} : memref<8x128xf32, #tpu.memory_space<vmem>>, vector<8x128xf32>,
    return
  }
  func.func @transform_0(%arg0: i32) -> (i32, i32) {
    %c0_i32 = arith.constant 0 : i32
    %c0_i32_0 = arith.constant 0 : i32
    %c0_i32_1 = arith.constant 0 : i32
    return %c0_i32, %c0_i32_0 : i32, i32
  }
  func.func @transform_1(%arg0: i32) -> (i32, i32) {
    %c0_i32 = arith.constant 0 : i32
    %c0_i32_0 = arith.constant 0 : i32
    return %c0_i32, %arg0 : i32, i32
  }
  func.func @transform_2(%arg0: i32) -> (i32, i32) {
    %c0_i32 = arith.constant 0 : i32
    %c0_i32_0 = arith.constant 0 : i32
    return %c0_i32, %arg0 : i32, i32
  }
}

module attributes {stable_mosaic.version = 11 : i64} {
  func.func @_layer1_bn_relu_kernel(%arg0: i32, %arg1: memref<8x128xbf16, #tpu.memory_space<vmem>>, %arg2: memref<128x128xbf16, #tpu.memory_space<vmem>>, %arg3: memref<8x128xf32, #tpu.memory_space<vmem>>) attributes {dimension_semantics = [#tpu.dimension_semantics<parallel>], iteration_bounds = array<i64: 1>, scalar_prefetch = 0 : i64, scratch_operands = 0 : i64, tpu.core_type = #tpu.core_type<tc>, window_params = [{pipeline_mode = #tpu.pipeline_mode<synchronous>, transform_indices = @transform_0, window_bounds = array<i64: 8, 128>}, {transform_indices = @transform_1, window_bounds = array<i64: 128, 128>}, {transform_indices = @transform_2, window_bounds = array<i64: 8, 128>}]} {
    %c0 = arith.constant 0 : index
    %c0_0 = arith.constant 0 : index
    %0 = vector.load %arg1[%c0, %c0_0] : memref<8x128xbf16, #tpu.memory_space<vmem>>, vector<8x128xbf16>
    %c0_1 = arith.constant 0 : index
    %c0_2 = arith.constant 0 : index
    %1 = vector.load %arg2[%c0_1, %c0_2] : memref<128x128xbf16, #tpu.memory_space<vmem>>, vector<128x128xbf16>
    %cst = arith.constant dense<0.000000e+00> : vector<8x128xf32>
    %2 = tpu.matmul %0, %1, %cst {dimension_numbers = #tpu.dot_dimension_numbers<[1], [0], [0], [1], [0, 0, 1, 1], [], []>} : vector<8x128xbf16>, vector<128x128xbf16>, vector<8x128xf32> -> vector<8x128xf32>
    %cst_3 = arith.constant dense<0.000000e+00> : vector<128xf32>
    %3 = vector.multi_reduction <add>, %2, %cst_3 [0] : vector<8x128xf32> to vector<128xf32>
    %4 = vector.shape_cast %3 : vector<128xf32> to vector<1x128xf32>
    %cst_4 = arith.constant 8.000000e+00 : f32
    %5 = vector.broadcast %cst_4 : f32 to vector<1x128xf32>
    %6 = arith.divf %4, %5 : vector<1x128xf32>
    %7 = vector.broadcast %6 : vector<1x128xf32> to vector<8x128xf32>
    %8 = arith.subf %2, %7 : vector<8x128xf32>
    %9 = vector.broadcast %6 : vector<1x128xf32> to vector<8x128xf32>
    %10 = arith.subf %2, %9 : vector<8x128xf32>
    %11 = arith.mulf %8, %10 : vector<8x128xf32>
    %cst_5 = arith.constant dense<0.000000e+00> : vector<128xf32>
    %12 = vector.multi_reduction <add>, %11, %cst_5 [0] : vector<8x128xf32> to vector<128xf32>
    %13 = vector.shape_cast %12 : vector<128xf32> to vector<1x128xf32>
    %cst_6 = arith.constant 8.000000e+00 : f32
    %14 = vector.broadcast %cst_6 : f32 to vector<1x128xf32>
    %15 = arith.divf %13, %14 : vector<1x128xf32>
    %16 = vector.broadcast %6 : vector<1x128xf32> to vector<8x128xf32>
    %17 = arith.subf %2, %16 : vector<8x128xf32>
    %cst_7 = arith.constant 9.99999974E-6 : f32
    %18 = vector.broadcast %cst_7 : f32 to vector<1x128xf32>
    %19 = arith.addf %15, %18 : vector<1x128xf32>
    %20 = math.rsqrt %19 : vector<1x128xf32>
    %21 = vector.broadcast %20 : vector<1x128xf32> to vector<8x128xf32>
    %22 = arith.mulf %17, %21 : vector<8x128xf32>
    %cst_8 = arith.constant 0.000000e+00 : f32
    %23 = vector.broadcast %cst_8 : f32 to vector<8x128xf32>
    %24 = arith.maximumf %22, %23 : vector<8x128xf32>
    %c0_9 = arith.constant 0 : index
    %c0_10 = arith.constant 0 : index
    %25 = vector.load %arg3[%c0_9, %c0_10] : memref<8x128xf32, #tpu.memory_space<vmem>>, vector<8x128xf32>
    tpu.vector_store %arg3[%c0_9, %c0_10], %24 {strides = array<i32>} : memref<8x128xf32, #tpu.memory_space<vmem>>, vector<8x128xf32>,
    return
  }
  func.func @transform_0(%arg0: i32) -> (i32, i32) {
    %c0_i32 = arith.constant 0 : i32
    %c0_i32_0 = arith.constant 0 : i32
    %c0_i32_1 = arith.constant 0 : i32
    return %c0_i32, %c0_i32_0 : i32, i32
  }
  func.func @transform_1(%arg0: i32) -> (i32, i32) {
    %c0_i32 = arith.constant 0 : i32
    %c0_i32_0 = arith.constant 0 : i32
    return %c0_i32, %arg0 : i32, i32
  }
  func.func @transform_2(%arg0: i32) -> (i32, i32) {
    %c0_i32 = arith.constant 0 : i32
    %c0_i32_0 = arith.constant 0 : i32
    return %c0_i32, %arg0 : i32, i32
  }
}

</mosaic_0001>

<llo_original>
// kernel: tpu_custom_call.1
$region0: #{tpu_custom_call.1}
  #allocation0 [shape = 'u32[]', space=smem, size = 0x4, offset = 0x4, fixed_abs, tag = 'smem constant byte address 0x4 - core index']
  #allocation1 [shape = 'u32[144,128]{1,0:T(1,128)}', space=vmem, size = 0x12000, scoped, tag = 'internal scratch']
  %s0 = inlined_call_operand.hbm [shape: bf16[8,128], index: 0, kind: input, shape index: {}]
  %s1 = inlined_call_operand.hbm [shape: bf16[128,128], index: 1, kind: input, shape index: {}]
  %s2 = inlined_call_operand.hbm [shape: f32[8,128], index: 2, kind: output, shape index: {}]
  %s3 = sld [smem:[#allocation0]]
  $region26: #{tpu_custom_call.1} parent=0
    _
  %s5 = ssub.s32 1, %s3
  %s6 = scalar_select 0, %s5, %s3
  $region1: #{tpu_custom_call.1} parent=0
    #allocation2 [shape = 'u8[2048]{0}', space=vmem, size = 0x800, scoped, tag = 'input window, operand 0, single buffered']
    #allocation3 [shape = 's32[1]{0}', space=sflag, size = 0x4, scoped, tag = 'scoped memory for tpu_custom_call.1']
    #allocation4 [shape = 's32[1]{0}', space=sflag, size = 0x4, scoped, tag = 'scoped memory for tpu_custom_call.1']
    #allocation5 [shape = 'u8[32768]{0}', space=vmem, size = 0x8000, scoped, tag = 'input window, operand 1, single buffered']
    #allocation6 [shape = 's32[1]{0}', space=sflag, size = 0x4, scoped, tag = 'scoped memory for tpu_custom_call.1']
    #allocation7 [shape = 'u8[4096]{0}', space=vmem, size = 0x1000, scoped, tag = 'output window, operand 0, single buffered']
    %7 = vsyncpa [#allocation3], 0
    %8 = vsyncpa [#allocation6], 0
    %9 = vsyncpa [#allocation4], 0
    // Predicated region
    $region2: #{tpu_custom_call.1} parent=1 // pred_check
      _
    $region3: #{tpu_custom_call.1} parent=1 // pred_check_branch
      %11 = sbr.rel (0) target = $region5
    $region4: #{tpu_custom_call.1} parent=1 // pred_region
      %s13 = ssub.s32 64, 64
      %14 = vsyncadd [#allocation3], %s13
      %s16 = sshll.u32 [#allocation2], 4
      %s17 = int_to_ptr.vmem [resolvable:$true] %s16
      %19 = dma.hbm_to_vmem [thread:$0]  %s0, 64, %s17, [#allocation3]
    $region5: #{tpu_custom_call.1} parent=1 // pred_fallthru
      _
    // Predicated region
    $region6: #{tpu_custom_call.1} parent=1 // pred_check
      _
    $region7: #{tpu_custom_call.1} parent=1 // pred_check_branch
      %21 = sbr.rel (0) target = $region9
    $region8: #{tpu_custom_call.1} parent=1 // pred_region
      %s23 = ssub.s32 1024, 1024
      %24 = vsyncadd [#allocation6], %s23
      %s25 = sshll.u32 [#allocation5], 4
      %s26 = int_to_ptr.vmem [resolvable:$true] %s25
      %31 = dma.hbm_to_vmem [thread:$0]  %s1, 1024, %s26, [#allocation6], 64, 64, 4
    $region9: #{tpu_custom_call.1} parent=1 // pred_fallthru
      _
    // Predicated region
    $region10: #{tpu_custom_call.1} parent=1 // pred_check
      _
    $region11: #{tpu_custom_call.1} parent=1 // pred_check_branch
      %33 = sbr.rel (0) target = $region13
    $region12: #{tpu_custom_call.1} parent=1 // pred_region
      %34 = dma.done [#allocation3], 64
    $region13: #{tpu_custom_call.1} parent=1 // pred_fallthru
      _
    // Predicated region
    $region14: #{tpu_custom_call.1} parent=1 // pred_check
      _
    $region15: #{tpu_custom_call.1} parent=1 // pred_check_branch
      %36 = sbr.rel (0) target = $region17
    $region16: #{tpu_custom_call.1} parent=1 // pred_region
      %37 = dma.done [#allocation6], 1024
    $region17: #{tpu_custom_call.1} parent=1 // pred_fallthru
      _
    %v39 = vld [vmem:[#allocation2] sm:$0xf]
    %v40 = vld [vmem:[#allocation5] sm:$0xf]
    %v41 = vld [vmem:[#allocation5 + $0x4] sm:$0xf]
    %v42 = vld [vmem:[#allocation5 + $0x8] sm:$0xf]
    %v43 = vld [vmem:[#allocation5 + $0xc] sm:$0xf]
    %v44 = vld [vmem:[#allocation5 + $0x10] sm:$0xf]
    %v45 = vld [vmem:[#allocation5 + $0x14] sm:$0xf]
    %v46 = vld [vmem:[#allocation5 + $0x18] sm:$0xf]
    %v47 = vld [vmem:[#allocation5 + $0x1c] sm:$0xf]
    %v48 = vld [vmem:[#allocation5 + $0x20] sm:$0xf]
    %v49 = vld [vmem:[#allocation5 + $0x24] sm:$0xf]
    %v50 = vld [vmem:[#allocation5 + $0x28] sm:$0xf]
    %v51 = vld [vmem:[#allocation5 + $0x2c] sm:$0xf]
    %v52 = vld [vmem:[#allocation5 + $0x30] sm:$0xf]
    %v53 = vld [vmem:[#allocation5 + $0x34] sm:$0xf]
    %v54 = vld [vmem:[#allocation5 + $0x38] sm:$0xf]
    %v55 = vld [vmem:[#allocation5 + $0x3c] sm:$0xf]
    %v72 = vunpack.c.l.b16 %v40
    %v73 = vunpack.c.l.b16 %v41
    %v74 = vunpack.c.l.b16 %v42
    %v75 = vunpack.c.l.b16 %v43
    %v76 = vunpack.c.l.b16 %v44
    %v77 = vunpack.c.l.b16 %v45
    %v78 = vunpack.c.l.b16 %v46
    %v79 = vunpack.c.l.b16 %v47
    %v80 = vunpack.c.l.b16 %v48
    %v81 = vunpack.c.l.b16 %v49
    %v82 = vunpack.c.l.b16 %v50
    %v83 = vunpack.c.l.b16 %v51
    %v84 = vunpack.c.l.b16 %v52
    %v85 = vunpack.c.l.b16 %v53
    %v86 = vunpack.c.l.b16 %v54
    %v87 = vunpack.c.l.b16 %v55
    %v88 = vpack.c.b16 %v73, %v72
    %v89 = vpack.c.b16 %v75, %v74
    %v90 = vpack.c.b16 %v77, %v76
    %v91 = vpack.c.b16 %v79, %v78
    %v92 = vpack.c.b16 %v81, %v80
    %v93 = vpack.c.b16 %v83, %v82
    %v94 = vpack.c.b16 %v85, %v84
    %v95 = vpack.c.b16 %v87, %v86
    %104 = vmatprep.subr.bf16.mxu0 0
    %105 = vmatpush1.bf16.msra.mxu0 %v88
    %106 = vmatprep.subr.bf16.mxu0 0
    %107 = vmatpush1.bf16.msra.mxu0 %v89
    %108 = vmatprep.subr.bf16.mxu0 0
    %109 = vmatpush1.bf16.msra.mxu0 %v90
    %110 = vmatprep.subr.bf16.mxu0 0
    %111 = vmatpush1.bf16.msra.mxu0 %v91
    %112 = vmatprep.subr.bf16.mxu0 0
    %113 = vmatpush1.bf16.msra.mxu0 %v92
    %114 = vmatprep.subr.bf16.mxu0 0
    %115 = vmatpush1.bf16.msra.mxu0 %v93
    %116 = vmatprep.subr.bf16.mxu0 0
    %117 = vmatpush1.bf16.msra.mxu0 %v94
    %118 = vmatprep.subr.bf16.mxu0 0
    %119 = vmatpush1.bf16.msra.mxu0 %v95
    %120 = vmatprep.subr.bf16.mxu0 0
    %121 = vmatpush1.bf16.msra.mxu0 0
    %122 = vmatprep.subr.bf16.mxu0 0
    %123 = vmatpush1.bf16.msra.mxu0 0
    %124 = vmatprep.subr.bf16.mxu0 0
    %125 = vmatpush1.bf16.msra.mxu0 0
    %126 = vmatprep.subr.bf16.mxu0 0
    %127 = vmatpush1.bf16.msra.mxu0 0
    %128 = vmatprep.subr.bf16.mxu0 0
    %129 = vmatpush1.bf16.msra.mxu0 0
    %130 = vmatprep.subr.bf16.mxu0 0
    %131 = vmatpush1.bf16.msra.mxu0 0
    %132 = vmatprep.subr.bf16.mxu0 0
    %133 = vmatpush1.bf16.msra.mxu0 0
    %134 = vmatprep.subr.bf16.mxu0 0
    %135 = vmatpush1.bf16.msra.mxu0 0
    %136 = vmatprep.mubr.bf16.mxu0 0
    %137 = vmatmul.mubr.bf16.gmra.mrb[0].mxu0 %v39
    %v138 = vpop.f32.mrb[0].mxu0
    %v139 = vadd.f32 0.0, %v138
    %v140 = vpop.f32.mrb[0].mxu0
    %v141 = vpop.f32.mrb[0].mxu0
    %v142 = vpop.f32.mrb[0].mxu0
    %143 = vdwg.mxu0
    %v144 = vrot.slane %v139, 4
    %v145 = vadd.f32 %v139, %v144
    %v146 = vrot.slane %v145, 2
    %v147 = vadd.f32 %v145, %v146
    %v148 = vrot.slane %v147, 1
    %v149 = vadd.f32 %v147, %v148
    %v150 = vrcp.pop 8.0
    %v151 = vmul.f32 %v149, %v150
    %v152 = vsub.f32 %v139, %v151
    %v153 = vmul.f32 %v152, %v152
    %v154 = vrot.slane %v153, 4
    %v155 = vadd.f32 %v153, %v154
    %v156 = vrot.slane %v155, 2
    %v157 = vadd.f32 %v155, %v156
    %v158 = vrot.slane %v157, 1
    %v159 = vadd.f32 %v157, %v158
    %v160 = vmul.f32 %v159, %v150
    %v161 = vadd.f32 %v160, 1e-05
    %v162 = vrsqrt.pop %v161
    %v163 = vmul.f32 %v152, %v162
    %v164 = vmax.f32 %v163, 0.0
    %165 = vst [vmem:[#allocation7] sm:$0xff] %v164
    // Predicated region
    $region18: #{tpu_custom_call.1} parent=1 // pred_check
      _
    $region19: #{tpu_custom_call.1} parent=1 // pred_check_branch
      %167 = sbr.rel (0) target = $region21
    $region20: #{tpu_custom_call.1} parent=1 // pred_region
      %s169 = ssub.s32 128, 128
      %170 = vsyncadd [#allocation4], %s169
      %s172 = sshll.u32 [#allocation7], 4
      %s173 = int_to_ptr.vmem [resolvable:$true] %s172
      %175 = dma.vmem_to_hbm [thread:$0]  %s173, 128, %s2, [#allocation4]
    $region21: #{tpu_custom_call.1} parent=1 // pred_fallthru
      _
    // Predicated region
    $region22: #{tpu_custom_call.1} parent=1 // pred_check
      _
    $region23: #{tpu_custom_call.1} parent=1 // pred_check_branch
      %177 = sbr.rel (0) target = $region25
    $region24: #{tpu_custom_call.1} parent=1 // pred_region
      %178 = dma.done [#allocation4], 128
    $region25: #{tpu_custom_call.1} parent=1 // pred_fallthru
      _
    %179 = vsyncpa [#allocation3], 1
    %180 = vsyncpa [#allocation6], 1
    %181 = vsyncpa [#allocation4], 1

// kernel: tpu_custom_call.1
$region0: #{tpu_custom_call.1}
  #allocation0 [shape = 'u32[]', space=smem, size = 0x4, offset = 0x4, fixed_abs, tag = 'smem constant byte address 0x4 - core index']
  #allocation1 [shape = 'u32[144,128]{1,0:T(1,128)}', space=vmem, size = 0x12000, scoped, tag = 'internal scratch']
  %s0 = inlined_call_operand.hbm [shape: bf16[8,128], index: 0, kind: input, shape index: {}]
  %s1 = inlined_call_operand.hbm [shape: bf16[128,128], index: 1, kind: input, shape index: {}]
  %s2 = inlined_call_operand.hbm [shape: f32[8,128], index: 2, kind: output, shape index: {}]
  %s3 = sld [smem:[#allocation0]]
  $region26: #{tpu_custom_call.1} parent=0
    _
  %s5 = ssub.s32 1, %s3
  %s6 = scalar_select 0, %s5, %s3
  $region1: #{tpu_custom_call.1} parent=0
    #allocation2 [shape = 'u8[2048]{0}', space=vmem, size = 0x800, scoped, tag = 'input window, operand 0, single buffered']
    #allocation3 [shape = 's32[1]{0}', space=sflag, size = 0x4, scoped, tag = 'scoped memory for tpu_custom_call.1']
    #allocation4 [shape = 's32[1]{0}', space=sflag, size = 0x4, scoped, tag = 'scoped memory for tpu_custom_call.1']
    #allocation5 [shape = 'u8[32768]{0}', space=vmem, size = 0x8000, scoped, tag = 'input window, operand 1, single buffered']
    #allocation6 [shape = 's32[1]{0}', space=sflag, size = 0x4, scoped, tag = 'scoped memory for tpu_custom_call.1']
    #allocation7 [shape = 'u8[4096]{0}', space=vmem, size = 0x1000, scoped, tag = 'output window, operand 0, single buffered']
    %7 = vsyncpa [#allocation3], 0
    %8 = vsyncpa [#allocation6], 0
    %9 = vsyncpa [#allocation4], 0
    // Predicated region
    $region2: #{tpu_custom_call.1} parent=1 // pred_check
      _
    $region3: #{tpu_custom_call.1} parent=1 // pred_check_branch
      %11 = sbr.rel (0) target = $region5
    $region4: #{tpu_custom_call.1} parent=1 // pred_region
      %s13 = ssub.s32 64, 64
      %14 = vsyncadd [#allocation3], %s13
      %s16 = sshll.u32 [#allocation2], 4
      %s17 = int_to_ptr.vmem [resolvable:$true] %s16
      %19 = dma.hbm_to_vmem [thread:$0]  %s0, 64, %s17, [#allocation3]
    $region5: #{tpu_custom_call.1} parent=1 // pred_fallthru
      _
    // Predicated region
    $region6: #{tpu_custom_call.1} parent=1 // pred_check
      _
    $region7: #{tpu_custom_call.1} parent=1 // pred_check_branch
      %21 = sbr.rel (0) target = $region9
    $region8: #{tpu_custom_call.1} parent=1 // pred_region
      %s23 = ssub.s32 1024, 1024
      %24 = vsyncadd [#allocation6], %s23
      %s25 = sshll.u32 [#allocation5], 4
      %s26 = int_to_ptr.vmem [resolvable:$true] %s25
      %31 = dma.hbm_to_vmem [thread:$0]  %s1, 1024, %s26, [#allocation6], 64, 64, 4
    $region9: #{tpu_custom_call.1} parent=1 // pred_fallthru
      _
    // Predicated region
    $region10: #{tpu_custom_call.1} parent=1 // pred_check
      _
    $region11: #{tpu_custom_call.1} parent=1 // pred_check_branch
      %33 = sbr.rel (0) target = $region13
    $region12: #{tpu_custom_call.1} parent=1 // pred_region
      %34 = dma.done [#allocation3], 64
    $region13: #{tpu_custom_call.1} parent=1 // pred_fallthru
      _
    // Predicated region
    $region14: #{tpu_custom_call.1} parent=1 // pred_check
      _
    $region15: #{tpu_custom_call.1} parent=1 // pred_check_branch
      %36 = sbr.rel (0) target = $region17
    $region16: #{tpu_custom_call.1} parent=1 // pred_region
      %37 = dma.done [#allocation6], 1024
    $region17: #{tpu_custom_call.1} parent=1 // pred_fallthru
      _
    %v39 = vld [vmem:[#allocation2] sm:$0xf]
    %v40 = vld [vmem:[#allocation5] sm:$0xf]
    %v41 = vld [vmem:[#allocation5 + $0x4] sm:$0xf]
    %v42 = vld [vmem:[#allocation5 + $0x8] sm:$0xf]
    %v43 = vld [vmem:[#allocation5 + $0xc] sm:$0xf]
    %v44 = vld [vmem:[#allocation5 + $0x10] sm:$0xf]
    %v45 = vld [vmem:[#allocation5 + $0x14] sm:$0xf]
    %v46 = vld [vmem:[#allocation5 + $0x18] sm:$0xf]
    %v47 = vld [vmem:[#allocation5 + $0x1c] sm:$0xf]
    %v48 = vld [vmem:[#allocation5 + $0x20] sm:$0xf]
    %v49 = vld [vmem:[#allocation5 + $0x24] sm:$0xf]
    %v50 = vld [vmem:[#allocation5 + $0x28] sm:$0xf]
    %v51 = vld [vmem:[#allocation5 + $0x2c] sm:$0xf]
    %v52 = vld [vmem:[#allocation5 + $0x30] sm:$0xf]
    %v53 = vld [vmem:[#allocation5 + $0x34] sm:$0xf]
    %v54 = vld [vmem:[#allocation5 + $0x38] sm:$0xf]
    %v55 = vld [vmem:[#allocation5 + $0x3c] sm:$0xf]
    %v72 = vunpack.c.l.b16 %v40
    %v73 = vunpack.c.l.b16 %v41
    %v74 = vunpack.c.l.b16 %v42
    %v75 = vunpack.c.l.b16 %v43
    %v76 = vunpack.c.l.b16 %v44
    %v77 = vunpack.c.l.b16 %v45
    %v78 = vunpack.c.l.b16 %v46
    %v79 = vunpack.c.l.b16 %v47
    %v80 = vunpack.c.l.b16 %v48
    %v81 = vunpack.c.l.b16 %v49
    %v82 = vunpack.c.l.b16 %v50
    %v83 = vunpack.c.l.b16 %v51
    %v84 = vunpack.c.l.b16 %v52
    %v85 = vunpack.c.l.b16 %v53
    %v86 = vunpack.c.l.b16 %v54
    %v87 = vunpack.c.l.b16 %v55
    %v88 = vpack.c.b16 %v73, %v72
    %v89 = vpack.c.b16 %v75, %v74
    %v90 = vpack.c.b16 %v77, %v76
    %v91 = vpack.c.b16 %v79, %v78
    %v92 = vpack.c.b16 %v81, %v80
    %v93 = vpack.c.b16 %v83, %v82
    %v94 = vpack.c.b16 %v85, %v84
    %v95 = vpack.c.b16 %v87, %v86
    %104 = vmatprep.subr.bf16.mxu0 0
    %105 = vmatpush1.bf16.msra.mxu0 %v88
    %106 = vmatprep.subr.bf16.mxu0 0
    %107 = vmatpush1.bf16.msra.mxu0 %v89
    %108 = vmatprep.subr.bf16.mxu0 0
    %109 = vmatpush1.bf16.msra.mxu0 %v90
    %110 = vmatprep.subr.bf16.mxu0 0
    %111 = vmatpush1.bf16.msra.mxu0 %v91
    %112 = vmatprep.subr.bf16.mxu0 0
    %113 = vmatpush1.bf16.msra.mxu0 %v92
    %114 = vmatprep.subr.bf16.mxu0 0
    %115 = vmatpush1.bf16.msra.mxu0 %v93
    %116 = vmatprep.subr.bf16.mxu0 0
    %117 = vmatpush1.bf16.msra.mxu0 %v94
    %118 = vmatprep.subr.bf16.mxu0 0
    %119 = vmatpush1.bf16.msra.mxu0 %v95
    %120 = vmatprep.subr.bf16.mxu0 0
    %121 = vmatpush1.bf16.msra.mxu0 0
    %122 = vmatprep.subr.bf16.mxu0 0
    %123 = vmatpush1.bf16.msra.mxu0 0
    %124 = vmatprep.subr.bf16.mxu0 0
    %125 = vmatpush1.bf16.msra.mxu0 0
    %126 = vmatprep.subr.bf16.mxu0 0
    %127 = vmatpush1.bf16.msra.mxu0 0
    %128 = vmatprep.subr.bf16.mxu0 0
    %129 = vmatpush1.bf16.msra.mxu0 0
    %130 = vmatprep.subr.bf16.mxu0 0
    %131 = vmatpush1.bf16.msra.mxu0 0
    %132 = vmatprep.subr.bf16.mxu0 0
    %133 = vmatpush1.bf16.msra.mxu0 0
    %134 = vmatprep.subr.bf16.mxu0 0
    %135 = vmatpush1.bf16.msra.mxu0 0
    %136 = vmatprep.mubr.bf16.mxu0 0
    %137 = vmatmul.mubr.bf16.gmra.mrb[0].mxu0 %v39
    %v138 = vpop.f32.mrb[0].mxu0
    %v139 = vadd.f32 0.0, %v138
    %v140 = vpop.f32.mrb[0].mxu0
    %v141 = vpop.f32.mrb[0].mxu0
    %v142 = vpop.f32.mrb[0].mxu0
    %143 = vdwg.mxu0
    %v144 = vrot.slane %v139, 4
    %v145 = vadd.f32 %v139, %v144
    %v146 = vrot.slane %v145, 2
    %v147 = vadd.f32 %v145, %v146
    %v148 = vrot.slane %v147, 1
    %v149 = vadd.f32 %v147, %v148
    %v150 = vrcp.pop 8.0
    %v151 = vmul.f32 %v149, %v150
    %v152 = vsub.f32 %v139, %v151
    %v153 = vmul.f32 %v152, %v152
    %v154 = vrot.slane %v153, 4
    %v155 = vadd.f32 %v153, %v154
    %v156 = vrot.slane %v155, 2
    %v157 = vadd.f32 %v155, %v156
    %v158 = vrot.slane %v157, 1
    %v159 = vadd.f32 %v157, %v158
    %v160 = vmul.f32 %v159, %v150
    %v161 = vadd.f32 %v160, 1e-05
    %v162 = vrsqrt.pop %v161
    %v163 = vmul.f32 %v152, %v162
    %v164 = vmax.f32 %v163, 0.0
    %165 = vst [vmem:[#allocation7] sm:$0xff] %v164
    // Predicated region
    $region18: #{tpu_custom_call.1} parent=1 // pred_check
      _
    $region19: #{tpu_custom_call.1} parent=1 // pred_check_branch
      %167 = sbr.rel (0) target = $region21
    $region20: #{tpu_custom_call.1} parent=1 // pred_region
      %s169 = ssub.s32 128, 128
      %170 = vsyncadd [#allocation4], %s169
      %s172 = sshll.u32 [#allocation7], 4
      %s173 = int_to_ptr.vmem [resolvable:$true] %s172
      %175 = dma.vmem_to_hbm [thread:$0]  %s173, 128, %s2, [#allocation4]
    $region21: #{tpu_custom_call.1} parent=1 // pred_fallthru
      _
    // Predicated region
    $region22: #{tpu_custom_call.1} parent=1 // pred_check
      _
    $region23: #{tpu_custom_call.1} parent=1 // pred_check_branch
      %177 = sbr.rel (0) target = $region25
    $region24: #{tpu_custom_call.1} parent=1 // pred_region
      %178 = dma.done [#allocation4], 128
    $region25: #{tpu_custom_call.1} parent=1 // pred_fallthru
      _
    %179 = vsyncpa [#allocation3], 1
    %180 = vsyncpa [#allocation6], 1
    %181 = vsyncpa [#allocation4], 1

</llo_original>
